<compile_context>
chip_gen: v5e
topology: v5e:2x2
jax: 0.10.0
libtpu: 0.0.40
codegen_flags: <defaults>
</compile_context>

<pallas_src>
import numpy as np
import jax
import jax.numpy as jnp
from jax.experimental import pallas as pl
from jax.experimental.pallas import tpu as pltpu

_LANE = 128                      # vreg lane width
_SUB = 8                         # f32 sublane count
_BLK_BYTES = 2 * 1024 * 1024     # per-block x byte budget (>=1 MiB tiles ~ 85%+ of HBM roofline)
_VMEM_LIMIT = 64 * 1024 * 1024   # raise v5e's 16 MiB default; footprint stays ~12 MiB


def _round_up(a, m):
    return (a + m - 1) // m * m


def _round_down(a, m):
    return a // m * m


def _scaled_mask_mul_kernel(x_ref, m_ref, o_ref):
    # out = x * (mask / q).  The shared "scale" tile already holds 1/q or 0, so
    # the kernel is a single VPU multiply (broadcast over the leading batch
    # block dim when present).  HBM DMA is the binding resource, not compute.
    o_ref[...] = x_ref[...] * m_ref[...]


def consistent_dropout(x, seed, p=0.5, training=True):
    """JAX/Pallas equivalent of ConsistentDropout.forward."""
    q = 1.0 - p
    if q == 1.0 or not training:
        return x
    if q <= 0.0:
        # p == 1.0: every element is dropped.  (torch would emit NaN from the
        # 1/0 scaling; return the sensible all-zeros instead.)
        return jnp.zeros_like(x)

    B = int(x.shape[0])
    feat = int(np.prod(x.shape[1:]))
    dtype = x.dtype
    dsize = jnp.dtype(dtype).itemsize

    # Shared Bernoulli(q) keep/scale row, drawn once per call in the activation
    # dtype.  Integer threshold compare on raw uint32 bits:
    #   P(bits < thr) = thr / 2^32 = q
    # (clamping thr to 2^32-1 biases keep-probability by <= 2^-32: negligible).
    # NOTE: `seed` must be a Python int; a traced seed would fail / retrace.
    key = jax.random.PRNGKey(int(seed))
    bits = jax.random.bits(key, (feat,), dtype=jnp.uint32)
    thr = np.uint32(min(int(round(q * float(1 << 32))), (1 << 32) - 1))
    scale = jnp.where(bits < thr, np.float32(1.0 / q), np.float32(0.0)).astype(dtype)

    if feat % _LANE == 0:
        # ---------------- main path: (B, R, 128) view ----------------
        R = feat // _LANE
        x3 = x.reshape(B, R, _LANE)          # contiguous reshape: free view
        m2 = scale.reshape(R, _LANE)

        # VMEM bytes of one batch element's (R, 128) slab, including the
        # sublane padding Mosaic applies when R is not a multiple of 8.
        row_blk_bytes = _round_up(R, _SUB) * _LANE * dsize

        if row_blk_bytes <= _BLK_BYTES:
            # Whole feature range fits the block budget: tile the batch axis
            # and keep the full (R, 128) mask resident in VMEM (block index
            # constant -> fetched once, never re-DMA'd).
            tile_b = min(B, max(1, _BLK_BYTES // row_blk_bytes))
            if tile_b >= B and B > 1:
                tile_b = pl.cdiv(B, 2)       # >=2 blocks -> dual-TC sharding on v7x
            n_b = pl.cdiv(B, tile_b)
            out = pl.pallas_call(
                _scaled_mask_mul_kernel,
                out_shape=jax.ShapeDtypeStruct((B, R, _LANE), dtype),
                grid=(n_b,),
                in_specs=[
                    pl.BlockSpec((tile_b, R, _LANE), lambda i: (i, 0, 0)),
                    pl.BlockSpec((R, _LANE), lambda i: (0, 0)),     # resident mask
                ],
                out_specs=pl.BlockSpec((tile_b, R, _LANE), lambda i: (i, 0, 0)),
                compiler_params=pltpu.CompilerParams(
                    dimension_semantics=("parallel",),
                    vmem_limit_bytes=_VMEM_LIMIT,
                ),
            )(x3, m2)
        else:
            # Large feature range: tile rows of the (R, 128) view in multiples
            # of 8 (full sublanes/lanes even when B < 8), batch on the
            # innermost grid axis so the mask tile's block index is constant
            # along it and is not re-fetched per batch element.
            tile_r = max(_SUB, _round_down(_BLK_BYTES // (_LANE * dsize), _SUB))
            n_r = pl.cdiv(R, tile_r)         # >= 2 here, so v7x shards the row axis
            out = pl.pallas_call(
                _scaled_mask_mul_kernel,
                out_shape=jax.ShapeDtypeStruct((B, R, _LANE), dtype),
                grid=(n_r, B),               # batch innermost
                in_specs=[
                    pl.BlockSpec((pl.Squeezed(), tile_r, _LANE),
                                 lambda r, b: (b, r, 0)),
                    pl.BlockSpec((tile_r, _LANE), lambda r, b: (r, 0)),
                ],
                out_specs=pl.BlockSpec((pl.Squeezed(), tile_r, _LANE),
                                       lambda r, b: (b, r, 0)),
                compiler_params=pltpu.CompilerParams(
                    dimension_semantics=("parallel", "parallel"),
                    vmem_limit_bytes=_VMEM_LIMIT,
                ),
            )(x3, m2)
        return out.reshape(x.shape)

    # ---------------- fallback: feat not a multiple of 128 ----------------
    # 2-D (B, feat) view, lane-dense feature tiles, 8-row batch tiles; ragged
    # edge tiles handled by Pallas, no host-side pad/slice of x.
    x2 = x.reshape(B, feat)
    m2 = scale.reshape(1, feat)

    if feat <= _LANE:
        tile_f = feat                        # full extent (may be < 128 lanes)
    else:
        tile_f = min(_round_up(feat, _LANE),
                     max(_LANE, _round_down(_BLK_BYTES // (_SUB * dsize), _LANE)))
        if tile_f >= feat:                   # keep >=2 feature tiles for dual-TC sharding
            tile_f = max(_LANE, _round_up(pl.cdiv(feat, 2), _LANE))
    if B <= _SUB:
        tile_b = B                           # full extent (small-B sublane under-fill
                                             # only hits this rare non-128-multiple path)
    else:
        tile_b = min(_round_up(B, _SUB),
                     max(_SUB, _round_down(_BLK_BYTES // (tile_f * dsize), _SUB)))
    n_f = pl.cdiv(feat, tile_f)
    n_b = pl.cdiv(B, tile_b)

    out = pl.pallas_call(
        _scaled_mask_mul_kernel,
        out_shape=jax.ShapeDtypeStruct((B, feat), dtype),
        grid=(n_f, n_b),                     # batch innermost: mask tile stays resident
        in_specs=[
            pl.BlockSpec((tile_b, tile_f), lambda f, b: (b, f)),
            pl.BlockSpec((1, tile_f), lambda f, b: (0, f)),
        ],
        out_specs=pl.BlockSpec((tile_b, tile_f), lambda f, b: (b, f)),
        compiler_params=pltpu.CompilerParams(
            dimension_semantics=("parallel", "parallel"),
            vmem_limit_bytes=_VMEM_LIMIT,
        ),
    )(x2, m2)
    return out.reshape(x.shape)


def _check_dropout(x, y, q):
    """Every element is either dropped (0) or scaled by 1/q, identically across the batch."""
    xn = np.asarray(x).reshape(x.shape[0], -1).astype(np.float64)
    yn = np.asarray(y).reshape(y.shape[0], -1).astype(np.float64)
    ratio = yn / np.where(xn == 0.0, 1.0, xn)
    inv_q = 1.0 / q
    ok = np.isclose(ratio, 0.0, atol=1e-6) | np.isclose(ratio, inv_q, rtol=1e-4)
    assert ok.all(), "bad mask scaling"
    assert np.allclose(ratio, ratio[0:1], rtol=1e-4, atol=1e-6), "mask not batch-consistent"


if __name__ == "__main__":
    # Small NCHW activation, like the conv features this dropout wraps.
    x = jax.random.normal(jax.random.PRNGKey(0), (2, 4, 16, 16), dtype=jnp.float32)
    y = jax.block_until_ready(consistent_dropout(x, seed=1234, p=0.5, training=True))
    _check_dropout(x, y, q=0.5)
    # Keep fraction should be ~q (1024 features -> very loose 6-sigma bound).
    kept = np.isclose(np.asarray(y)[0] / np.asarray(x)[0], 2.0, rtol=1e-4)
    assert 0.3 < float(kept.mean()) < 0.7, "keep fraction far from q"

    # Eval mode and p == 0 are passthrough; p == 1 drops everything.
    y_eval = jax.block_until_ready(consistent_dropout(x, seed=1234, p=0.5, training=False))
    assert np.array_equal(np.asarray(y_eval), np.asarray(x))
    y_p0 = jax.block_until_ready(consistent_dropout(x, seed=1234, p=0.0, training=True))
    assert np.array_equal(np.asarray(y_p0), np.asarray(x))
    y_p1 = jax.block_until_ready(consistent_dropout(x, seed=1234, p=1.0, training=True))
    assert np.all(np.asarray(y_p1) == 0.0)

    # Large-feature path (row-tiled, squeezed batch dim, ragged last row tile).
    x_big = jax.random.normal(jax.random.PRNGKey(1), (2, 9, 256, 256), dtype=jnp.float32)
    y_big = jax.block_until_ready(consistent_dropout(x_big, seed=7, p=0.5, training=True))
    _check_dropout(x_big, y_big, q=0.5)

    # Fallback path: feature count not a multiple of 128 (plus a ragged-lane case).
    x_odd = jax.random.normal(jax.random.PRNGKey(2), (2, 3, 5, 7), dtype=jnp.float32)
    y_odd = jax.block_until_ready(consistent_dropout(x_odd, seed=3, p=0.25, training=True))
    _check_dropout(x_odd, y_odd, q=0.75)
    x_rag = jax.random.normal(jax.random.PRNGKey(3), (2, 200), dtype=jnp.float32)
    y_rag = jax.block_until_ready(consistent_dropout(x_rag, seed=4, p=0.5, training=True))
    _check_dropout(x_rag, y_rag, q=0.5)

    print("KERNEL_OK")
</pallas_src>

<mosaic_0001>
module attributes {stable_mosaic.version = 11 : i64} {
  func.func @_scaled_mask_mul_kernel(%arg0: i32, %arg1: memref<1x8x128xf32, #tpu.memory_space<vmem>>, %arg2: memref<8x128xf32, #tpu.memory_space<vmem>>, %arg3: memref<1x8x128xf32, #tpu.memory_space<vmem>>) attributes {dimension_semantics = [#tpu.dimension_semantics<parallel>], iteration_bounds = array<i64: 2>, scalar_prefetch = 0 : i64, scratch_operands = 0 : i64, tpu.core_type = #tpu.core_type<tc>, window_params = [{transform_indices = @transform_0, window_bounds = array<i64: 1, 8, 128>}, {pipeline_mode = #tpu.pipeline_mode<synchronous>, transform_indices = @transform_1, window_bounds = array<i64: 8, 128>}, {transform_indices = @transform_2, window_bounds = array<i64: 1, 8, 128>}]} {
    %c0 = arith.constant 0 : index
    %c0_0 = arith.constant 0 : index
    %c0_1 = arith.constant 0 : index
    %0 = vector.load %arg1[%c0, %c0_0, %c0_1] : memref<1x8x128xf32, #tpu.memory_space<vmem>>, vector<1x8x128xf32>
    %c0_2 = arith.constant 0 : index
    %c0_3 = arith.constant 0 : index
    %1 = vector.load %arg2[%c0_2, %c0_3] : memref<8x128xf32, #tpu.memory_space<vmem>>, vector<8x128xf32>
    %2 = vector.shape_cast %1 : vector<8x128xf32> to vector<1x8x128xf32>
    %3 = arith.mulf %0, %2 : vector<1x8x128xf32>
    %c0_4 = arith.constant 0 : index
    %c0_5 = arith.constant 0 : index
    %c0_6 = arith.constant 0 : index
    %4 = vector.load %arg3[%c0_4, %c0_5, %c0_6] : memref<1x8x128xf32, #tpu.memory_space<vmem>>, vector<1x8x128xf32>
    tpu.vector_store %arg3[%c0_4, %c0_5, %c0_6], %3 {strides = array<i32>} : memref<1x8x128xf32, #tpu.memory_space<vmem>>, vector<1x8x128xf32>,
    return
  }
  func.func @transform_0(%arg0: i32) -> (i32, i32, i32) {
    %c0_i32 = arith.constant 0 : i32
    %c0_i32_0 = arith.constant 0 : i32
    %c0_i32_1 = arith.constant 0 : i32
    return %arg0, %c0_i32, %c0_i32_0 : i32, i32, i32
  }
  func.func @transform_1(%arg0: i32) -> (i32, i32) {
    %c0_i32 = arith.constant 0 : i32
    %c0_i32_0 = arith.constant 0 : i32
    %c0_i32_1 = arith.constant 0 : i32
    return %c0_i32, %c0_i32_0 : i32, i32
  }
  func.func @transform_2(%arg0: i32) -> (i32, i32, i32) {
    %c0_i32 = arith.constant 0 : i32
    %c0_i32_0 = arith.constant 0 : i32
    %c0_i32_1 = arith.constant 0 : i32
    return %arg0, %c0_i32, %c0_i32_0 : i32, i32, i32
  }
}

</mosaic_0001>

<llo_original>
// kernel: tpu_custom_call.1
$region0: #{tpu_custom_call.1}
  #allocation0 [shape = 'u32[]', space=smem, size = 0x4, offset = 0x4, fixed_abs, tag = 'smem constant byte address 0x4 - core index']
  #allocation1 [shape = 'u32[72,128]{1,0:T(1,128)}', space=vmem, size = 0x9000, scoped, tag = 'internal scratch']
  %s0 = inlined_call_operand.hbm [shape: f32[2,8,128], index: 0, kind: input, shape index: {}]
  %s1 = inlined_call_operand.hbm [shape: f32[8,128], index: 1, kind: input, shape index: {}]
  %s2 = inlined_call_operand.hbm [shape: f32[2,8,128], index: 2, kind: output, shape index: {}]
  %s3 = sld [smem:[#allocation0]]
  $region49: #{tpu_custom_call.1} parent=0
    _
  %s5 = ssub.s32 1, %s3
  %s6 = scalar_select 0, %s5, %s3
  $region1: #{tpu_custom_call.1} parent=0
    #allocation2 [shape = 'u8[8192]{0}', space=vmem, size = 0x2000, scoped, tag = 'input window, operand 0']
    #allocation3 [shape = 's32[2]{0}', space=sflag, size = 0x8, scoped, tag = 'scoped memory for tpu_custom_call.1']
    #allocation4 [shape = 's32[2]{0}', space=sflag, size = 0x8, scoped, tag = 'scoped memory for tpu_custom_call.1']
    #allocation5 [shape = 'u8[4096]{0}', space=vmem, size = 0x1000, scoped, tag = 'input window, operand 1, single buffered']
    #allocation6 [shape = 's32[1]{0}', space=sflag, size = 0x4, scoped, tag = 'scoped memory for tpu_custom_call.1']
    #allocation7 [shape = 'u8[8192]{0}', space=vmem, size = 0x2000, scoped, tag = 'output window, operand 0']
    %7 = vsyncpa [#allocation3], 0
    %s8 = scalar_lea.sflag [#allocation3], 1
    %9 = vsyncpa %s8, 0
    %10 = vsyncpa [#allocation6], 0
    %11 = vsyncpa [#allocation4], 0
    %s12 = scalar_lea.sflag [#allocation4], 1
    %13 = vsyncpa %s12, 0
    loop: start=0, step=1, limit=4
    $region2: #{tpu_custom_call.1} parent=1 // loop_pre_header
      _
    $region3: #{tpu_custom_call.1} parent=1 // loop_header
      %s15 = sphi 0, %s19
      %p16 = scmp.ge.s32.totalorder %s15, 4
      %s25 = sphi 0, %s27
      %s28 = sphi 0, %s25
      %s29 = sphi 0, %s28
      %s45 = sphi 0, %s29
      %s49 = sphi 0, %s49
      %s51 = sphi 0, %s49
      %s52 = sphi 0, %s51
      %s66 = sphi 0, %s52
      %s72 = sphi 0, %s74
      %s75 = sphi 0, %s72
      %s76 = sphi 0, %s75
      %s92 = sphi 0, %s76
    $region4: #{tpu_custom_call.1} parent=1 // loop_header_branch
      %18 = sbr.rel (%p16) target = $region8
    $region5: #{tpu_custom_call.1} parent=1 // loop_body
      %s20 = ssub.s32 %s15, 1
      %s21 = ssub.s32 %s15, 2
      %s22 = sadd.s32 %s15, 1
      %s23 = ssub.s32 %s15, %s22
      %p24 = scmp.eq.s32.totalorder %s23, 0
      %s26 = sadd.s32 %s25, 1
      %s27 = scalar_select %p24, %s25, %s26
      %p30 = pneg %p24
      %p31 = scmp.eq.s32.totalorder %s15, 1
      %p32 = por %p30, %p31
      %p33 = scmp.ne.s32.totalorder %s25, %s28
      %p34 = scmp.eq.s32.totalorder %s15, 0
      %p35 = por %p33, %p34
      %p36 = scmp.ne.s32.totalorder %s25, %s28
      %p37 = scmp.eq.s32.totalorder %s20, 1
      %p38 = por %p36, %p37
      %p39 = scmp.ne.s32.totalorder %s28, %s29
      %p40 = scmp.eq.s32.totalorder %s20, 0
      %p41 = por %p39, %p40
      %p42 = scmp.ne.s32.totalorder %s28, %s29
      %p43 = scmp.eq.s32.totalorder %s21, 1
      %p44 = por %p42, %p43
      %p46 = scmp.ne.s32.totalorder %s29, %s45
      %p47 = scmp.eq.s32.totalorder %s21, 0
      %p48 = por %p46, %p47
      %s50 = sadd.s32 %s49, 1
      %p53 = scmp.eq.s32.totalorder %s15, 1
      %p54 = scmp.ne.s32.totalorder %s49, %s51
      %p55 = scmp.eq.s32.totalorder %s15, 0
      %p56 = por %p54, %p55
      %p57 = scmp.ne.s32.totalorder %s49, %s51
      %p58 = scmp.eq.s32.totalorder %s20, 1
      %p59 = por %p57, %p58
      %p60 = scmp.ne.s32.totalorder %s51, %s52
      %p61 = scmp.eq.s32.totalorder %s20, 0
      %p62 = por %p60, %p61
      %p63 = scmp.ne.s32.totalorder %s51, %s52
      %p64 = scmp.eq.s32.totalorder %s21, 1
      %p65 = por %p63, %p64
      %p67 = scmp.ne.s32.totalorder %s52, %s66
      %p68 = scmp.eq.s32.totalorder %s21, 0
      %p69 = por %p67, %p68
      %s70 = ssub.s32 %s15, %s22
      %p71 = scmp.eq.s32.totalorder %s70, 0
      %s73 = sadd.s32 %s72, 1
      %s74 = scalar_select %p71, %s72, %s73
      %p77 = pneg %p71
      %p78 = scmp.eq.s32.totalorder %s15, 1
      %p79 = por %p77, %p78
      %p80 = scmp.ne.s32.totalorder %s72, %s75
      %p81 = scmp.eq.s32.totalorder %s15, 0
      %p82 = por %p80, %p81
      %p83 = scmp.ne.s32.totalorder %s72, %s75
      %p84 = scmp.eq.s32.totalorder %s20, 1
      %p85 = por %p83, %p84
      %p86 = scmp.ne.s32.totalorder %s75, %s76
      %p87 = scmp.eq.s32.totalorder %s20, 0
      %p88 = por %p86, %p87
      %p89 = scmp.ne.s32.totalorder %s75, %s76
      %p90 = scmp.eq.s32.totalorder %s21, 1
      %p91 = por %p89, %p90
      %p93 = scmp.ne.s32.totalorder %s76, %s92
      %p94 = scmp.eq.s32.totalorder %s21, 0
      %p95 = por %p93, %p94
      %p96 = scmp.le.s32.totalorder 1, %s15
      %p97 = scmp.lt.s32.totalorder %s15, 3
      %p98 = pnand %p96, %p97
      %p99 = pneg %p98
      // Predicated region
      $region9: #{tpu_custom_call.1} parent=5 // pred_check
        _
      $region10: #{tpu_custom_call.1} parent=5 // pred_check_branch
        %101 = sbr.rel (%p98) target = $region12
      $region11: #{tpu_custom_call.1} parent=5 // pred_region
        %s102 = ssub.s32 %s15, 1
        // Predicated region
        $region13: #{tpu_custom_call.1} parent=11 // pred_check
          %p103 = pneg %p62
        $region14: #{tpu_custom_call.1} parent=11 // pred_check_branch
          %105 = sbr.rel (%p103) target = $region16
        $region15: #{tpu_custom_call.1} parent=11 // pred_region
          %107 = vsyncadd [#allocation6], 0
          %s109 = sshll.u32 %s1, 4
          %s110 = int_to_ptr.hbm [resolvable:$true] %s109
          %s111 = sshll.u32 [#allocation5], 4
          %s112 = int_to_ptr.vmem [resolvable:$true] %s111
          %114 = dma.hbm_to_vmem [thread:$0]  %s110, 128, %s112, [#allocation6]
        $region16: #{tpu_custom_call.1} parent=11 // pred_fallthru
          _
      $region12: #{tpu_custom_call.1} parent=5 // pred_fallthru
        _
      %p115 = scmp.lt.s32.totalorder %s15, 2
      // Predicated region
      $region17: #{tpu_custom_call.1} parent=5 // pred_check
        %p116 = pneg %p115
      $region18: #{tpu_custom_call.1} parent=5 // pred_check_branch
        %118 = sbr.rel (%p116) target = $region20
      $region19: #{tpu_custom_call.1} parent=5 // pred_region
        // Predicated region
        $region21: #{tpu_custom_call.1} parent=19 // pred_check
          %p119 = pneg %p35
        $region22: #{tpu_custom_call.1} parent=19 // pred_check_branch
          %121 = sbr.rel (%p119) target = $region24
        $region23: #{tpu_custom_call.1} parent=19 // pred_region
          %s122 = sand.u32 %s25, 1
          %s123 = scalar_lea.sflag [#allocation3], %s122
          %s124 = sand.u32 %s25, 1
          %s125 = smul.addr %s124, 8
          %s126 = scalar_lea.vmem [#allocation2], %s125
          %128 = vsyncadd %s123, 0
          %s129 = smul.addr %s15, 8
          %s130 = scalar_lea.hbm %s0, %s129
          %s132 = sshll.u32 %s130, 4
          %s133 = int_to_ptr.hbm [resolvable:$true] %s132
          %s134 = sshll.u32 %s126, 4
          %s135 = int_to_ptr.vmem [resolvable:$true] %s134
          %137 = dma.hbm_to_vmem [thread:$0]  %s133, 128, %s135, %s123
        $region24: #{tpu_custom_call.1} parent=19 // pred_fallthru
          _
      $region20: #{tpu_custom_call.1} parent=5 // pred_fallthru
        _
      %p138 = scmp.le.s32.totalorder 1, %s15
      %p139 = scmp.lt.s32.totalorder %s15, 3
      %p140 = pnand %p138, %p139
      %p141 = pneg %p140
      // Predicated region
      $region25: #{tpu_custom_call.1} parent=5 // pred_check
        _
      $region26: #{tpu_custom_call.1} parent=5 // pred_check_branch
        %143 = sbr.rel (%p140) target = $region28
      $region27: #{tpu_custom_call.1} parent=5 // pred_region
        %s144 = ssub.s32 %s15, 1
        %s145 = sand.u32 %s28, 1
        %s146 = scalar_lea.sflag [#allocation3], %s145
        %s147 = sand.u32 %s28, 1
        %s148 = smul.addr %s147, 8
        %s149 = scalar_lea.vmem [#allocation2], %s148
        // Predicated region
        $region29: #{tpu_custom_call.1} parent=27 // pred_check
          %p150 = pneg %p41
        $region30: #{tpu_custom_call.1} parent=27 // pred_check_branch
          %152 = sbr.rel (%p150) target = $region32
        $region31: #{tpu_custom_call.1} parent=27 // pred_region
          %154 = dma.done %s146, 128
        $region32: #{tpu_custom_call.1} parent=27 // pred_fallthru
          _
        // Predicated region
        $region33: #{tpu_custom_call.1} parent=27 // pred_check
          %p155 = pneg %p62
        $region34: #{tpu_custom_call.1} parent=27 // pred_check_branch
          %157 = sbr.rel (%p155) target = $region36
        $region35: #{tpu_custom_call.1} parent=27 // pred_region
          %159 = dma.done [#allocation6], 128
        $region36: #{tpu_custom_call.1} parent=27 // pred_fallthru
          _
        %s160 = sand.u32 %s28, 1
        %s161 = scalar_lea.sflag [#allocation3], %s160
        %s162 = sand.u32 %s28, 1
        %s163 = smul.addr %s162, 8
        %s164 = scalar_lea.vmem [#allocation2], %s163
        %p165 = pneg %p41
        %p166 = pneg %p38
        %p167 = pneg %p62
        %p168 = pneg %p59
        %p169 = pneg %p88
        %p170 = pneg %p85
        %s171 = sand.u32 %s75, 1
        %s172 = scalar_lea.sflag [#allocation4], %s171
        %s173 = sand.u32 %s75, 1
        %s174 = smul.addr %s173, 8
        %s175 = scalar_lea.vmem [#allocation7], %s174
        %v176 = vld [vmem:[%s149] sm:$0xff]
        %v177 = vld [vmem:[#allocation5] sm:$0xff]
        %v178 = vmul.f32 %v176, %v177
        %179 = vst [vmem:[%s175] sm:$0xff] %v178
        %s180 = sand.u32 %s75, 1
        %s181 = scalar_lea.sflag [#allocation4], %s180
        %s182 = sand.u32 %s75, 1
        %s183 = smul.addr %s182, 8
        %s184 = scalar_lea.vmem [#allocation7], %s183
        // Predicated region
        $region37: #{tpu_custom_call.1} parent=27 // pred_check
          %p185 = pneg %p85
        $region38: #{tpu_custom_call.1} parent=27 // pred_check_branch
          %187 = sbr.rel (%p185) target = $region40
        $region39: #{tpu_custom_call.1} parent=27 // pred_region
          %189 = vsyncadd %s181, 0
          %s190 = smul.addr %s20, 8
          %s191 = scalar_lea.hbm %s2, %s190
          %s193 = sshll.u32 %s184, 4
          %s194 = int_to_ptr.vmem [resolvable:$true] %s193
          %s195 = sshll.u32 %s191, 4
          %s196 = int_to_ptr.hbm [resolvable:$true] %s195
          %198 = dma.vmem_to_hbm [thread:$0]  %s194, 128, %s196, %s181
        $region40: #{tpu_custom_call.1} parent=27 // pred_fallthru
          _
      $region28: #{tpu_custom_call.1} parent=5 // pred_fallthru
        _
      %p199 = scmp.le.s32.totalorder 2, %s15
      // Predicated region
      $region41: #{tpu_custom_call.1} parent=5 // pred_check
        %p200 = pneg %p199
      $region42: #{tpu_custom_call.1} parent=5 // pred_check_branch
        %202 = sbr.rel (%p200) target = $region44
      $region43: #{tpu_custom_call.1} parent=5 // pred_region
        %s203 = ssub.s32 %s15, 2
        // Predicated region
        $region45: #{tpu_custom_call.1} parent=43 // pred_check
          %p204 = pneg %p91
        $region46: #{tpu_custom_call.1} parent=43 // pred_check_branch
          %206 = sbr.rel (%p204) target = $region48
        $region47: #{tpu_custom_call.1} parent=43 // pred_region
          %s207 = sand.u32 %s76, 1
          %s208 = scalar_lea.sflag [#allocation4], %s207
          %s209 = sand.u32 %s76, 1
          %s210 = smul.addr %s209, 8
          %s211 = scalar_lea.vmem [#allocation7], %s210
          %213 = dma.done %s208, 128
        $region48: #{tpu_custom_call.1} parent=43 // pred_fallthru
          _
      $region44: #{tpu_custom_call.1} parent=5 // pred_fallthru
        _
    $region6: #{tpu_custom_call.1} parent=1 // loop_footer
      %s19 = sadd.s32 1, %s15
    $region7: #{tpu_custom_call.1} parent=1 // loop_footer_branch
      %14 = sbr.rel target = $region3
    $region8: #{tpu_custom_call.1} parent=1 // loop_exit
      _
    %214 = vsyncpa [#allocation3], 1
    %s215 = scalar_lea.sflag [#allocation3], 1
    %216 = vsyncpa %s215, 1
    %217 = vsyncpa [#allocation6], 1
    %218 = vsyncpa [#allocation4], 1
    %s219 = scalar_lea.sflag [#allocation4], 1
    %220 = vsyncpa %s219, 1

</llo_original>
